<compile_context>
chip_gen: v7x
topology: tpu7x:2x2x1
jax: 0.10.0
libtpu: 0.0.40
codegen_flags: <defaults>
</compile_context>

<pallas_src>
import functools

import jax
import jax.numpy as jnp
from jax import lax
from jax.experimental import pallas as pl
from jax.experimental.pallas import tpu as pltpu

SEQ_LEN = 8
OBS_DIM = 2 * 4           # GRU input_size = 8
HIDDEN = 64               # GRU hidden size
OUT_DIM = 3 * 2           # Linear output = 6

HP = 128                  # hidden state padded to one full 128-lane block
GATE_W = 2 * HP           # dense gate width: [r|z] block + [n|pad] block
OUT_PAD = 128             # lane-dense output width (sliced to OUT_DIM outside)

assert 2 * HIDDEN == HP, "dense [r|z] packing assumes 2*HIDDEN == 128"


def _round_up(n, m):
    return ((n + m - 1) // m) * m


def _choose_tb(batch):
    """Batch tile: >=2 grid tiles whenever B > 8 (v7x megacore), capped at 128."""
    if batch <= 8:
        return 8
    return min(128, _round_up(-(-batch // 2), 16))  # multiple of 16 -> 2 sub-chains


# --------------------------------------------------------------------------- #
# Kernel: unrolled GRU recurrence (h @ W_hh on the serial path) + output head #
# --------------------------------------------------------------------------- #
def _gru_recurrence_kernel(gi_ref, whh_ref, bhhn_ref, wout_ref, bout_ref,
                           o_ref, *, seq_len, n_chains):
    # gi_ref:   (T, TB, GATE_W) f32  precomputed x@W_ih (+ b_ih, + b_hh for r,z)
    # whh_ref:  (HP, GATE_W)    bf16 rows >= H are zero; cols [r|z][n|0]
    # bhhn_ref: (1, HP)         f32  b_hh of the n gate (lanes 0:H), rest zero
    # wout_ref: (HP, OUT_PAD)   bf16 rows >= H zero, cols >= OUT_DIM zero
    # bout_ref: (1, OUT_PAD)    f32
    # o_ref:    (TB, OUT_PAD)   f32
    TB = o_ref.shape[0]
    sub = TB // n_chains

    whh = whh_ref[...]
    wout = wout_ref[...]
    bout = bout_ref[...]
    # Hoisted broadcast (reused by every step / every chain).
    bhhn = jnp.broadcast_to(bhhn_ref[...], (sub, HP))

    # Independent per-sub-chain hidden states (lanes 0:H valid, H:HP zero).
    hs = [jnp.zeros((sub, HP), jnp.float32) for _ in range(n_chains)]

    for t in range(seq_len):                       # fully unrolled: one basic block
        gi_t = gi_ref[t]                           # (TB, GATE_W), off the serial path
        for c in range(n_chains):
            gi = gi_t[c * sub:(c + 1) * sub]       # (sub, GATE_W), static slice
            gh = jnp.dot(hs[c].astype(jnp.bfloat16), whh,
                         preferred_element_type=jnp.float32)   # (sub, GATE_W)
            # Single sigmoid over the dense [r|z] 128-lane block.
            rz = jax.nn.sigmoid(gi[:, :HP] + gh[:, :HP])        # r:0:H, z:H:2H
            # n = tanh(gi_n + r * (gh_n + b_hh_n)); pad lanes stay exactly 0.
            n = jnp.tanh(gi[:, HP:] + rz * (gh[:, HP:] + bhhn))
            # Align z to lanes 0:H (shift by half the 128-lane block -> XLU).
            zr = pltpu.roll(rz, shift=HIDDEN, axis=1)
            # h' = (1-z)*n + z*h  ==  n + z*(h - n); pad lanes remain 0.
            hs[c] = n + zr * (hs[c] - n)

    # Output head: last hidden state -> Linear(64, 6), lane-dense store.
    for c in range(n_chains):
        o_ref[c * sub:(c + 1) * sub, :] = (
            jnp.dot(hs[c].astype(jnp.bfloat16), wout,
                    preferred_element_type=jnp.float32) + bout)


# --------------------------------------------------------------------------- #
# Parameter repacking (PyTorch layout -> dense lane-aligned blocks)           #
# --------------------------------------------------------------------------- #
def _prep_params(params):
    H = HIDDEN
    w_ih = params["w_ih"].astype(jnp.float32)      # (3H, D_in)
    w_hh = params["w_hh"].astype(jnp.float32)      # (3H, H)
    b_ih = params["b_ih"].astype(jnp.float32)      # (3H,)
    b_hh = params["b_hh"].astype(jnp.float32)      # (3H,)

    def pack_cols(m_t, n_rows):
        # m_t: (K, 3H) with gate order r|z|n  ->  (n_rows, GATE_W) dense layout.
        k = m_t.shape[0]
        out = jnp.zeros((n_rows, GATE_W), jnp.float32)
        out = out.at[:k, :2 * H].set(m_t[:, :2 * H])        # [r|z] -> lanes 0:128
        out = out.at[:k, HP:HP + H].set(m_t[:, 2 * H:])     # n     -> lanes 128:192
        return out

    wih_p = pack_cols(w_ih.T, OBS_DIM)                                   # (D_in, GATE_W) f32
    whh_p = pack_cols(w_hh.T, HP).astype(jnp.bfloat16)                   # (HP, GATE_W) bf16

    # Biases folded into gi: r,z get b_ih+b_hh; n gets only b_ih
    # (b_hh_n must stay inside r * (.), per the GRU formulation).
    bias = jnp.zeros((GATE_W,), jnp.float32)
    bias = bias.at[:2 * H].set(b_ih[:2 * H] + b_hh[:2 * H])
    bias = bias.at[HP:HP + H].set(b_ih[2 * H:])

    bhh_n = jnp.zeros((1, HP), jnp.float32).at[0, :H].set(b_hh[2 * H:])  # (1, HP) f32

    wout_p = jnp.zeros((HP, OUT_PAD), jnp.float32)
    wout_p = wout_p.at[:H, :OUT_DIM].set(
        params["w_out"].T.astype(jnp.float32)).astype(jnp.bfloat16)      # (HP, OUT_PAD) bf16
    bout_p = jnp.zeros((1, OUT_PAD), jnp.float32).at[0, :OUT_DIM].set(
        params["b_out"].astype(jnp.float32))
    return wih_p, bias, whh_p, bhh_n, wout_p, bout_p


# --------------------------------------------------------------------------- #
# Forward wrapper                                                             #
# --------------------------------------------------------------------------- #
@functools.partial(jax.jit, static_argnames=("seq_len", "obs_dim"))
def lstm_path_forward(x, params, *, seq_len=SEQ_LEN, obs_dim=OBS_DIM):
    """x: (B, seq_len*obs_dim) or (B, seq_len, obs_dim). Returns (B, 6)."""
    x = x.reshape(-1, seq_len, obs_dim).astype(jnp.float32)   # mirrors x.view(...)
    B = x.shape[0]

    TB = _choose_tb(B)
    B_pad = _round_up(B, TB)
    n_chains = 2 if TB >= 16 else 1
    if B_pad != B:
        x = jnp.pad(x, ((0, B_pad - B), (0, 0), (0, 0)))

    wih_p, bias_p, whh_p, bhh_n, wout_p, bout_p = _prep_params(params)

    # Input projection hoisted to XLA (off the serial path): lane-dense,
    # time-major (T, B_pad, GATE_W) f32 with biases pre-added.
    gi = jnp.einsum("btd,dg->tbg", x, wih_p) + bias_p

    kernel = functools.partial(_gru_recurrence_kernel,
                               seq_len=seq_len, n_chains=n_chains)

    out_pad = pl.pallas_call(
        kernel,
        out_shape=jax.ShapeDtypeStruct((B_pad, OUT_PAD), jnp.float32),
        grid=(B_pad // TB,),
        in_specs=[
            pl.BlockSpec((seq_len, TB, GATE_W), lambda i: (0, i, 0)),  # gi (per-tile, pipelined)
            pl.BlockSpec((HP, GATE_W), lambda i: (0, 0)),              # W_hh (bf16, constant)
            pl.BlockSpec((1, HP), lambda i: (0, 0)),                   # b_hh_n
            pl.BlockSpec((HP, OUT_PAD), lambda i: (0, 0)),             # W_out (bf16, constant)
            pl.BlockSpec((1, OUT_PAD), lambda i: (0, 0)),              # b_out
        ],
        out_specs=pl.BlockSpec((TB, OUT_PAD), lambda i: (i, 0)),
        compiler_params=pltpu.CompilerParams(
            dimension_semantics=("parallel",)),
    )(gi, whh_p, bhh_n, wout_p, bout_p)

    return out_pad[:B, :OUT_DIM]


# --------------------------------------------------------------------------- #
# Init + pure-JAX reference (matches torch.nn.GRU + Linear, f32)              #
# --------------------------------------------------------------------------- #
def init_params(key):
    """Deterministic init mimicking PyTorch's uniform(-1/sqrt(H), 1/sqrt(H))."""
    ks = jax.random.split(key, 6)
    bound = 1.0 / jnp.sqrt(jnp.float32(HIDDEN))

    def u(k, shape):
        return jax.random.uniform(k, shape, jnp.float32, -bound, bound)

    return {
        "w_ih": u(ks[0], (3 * HIDDEN, OBS_DIM)),
        "w_hh": u(ks[1], (3 * HIDDEN, HIDDEN)),
        "b_ih": u(ks[2], (3 * HIDDEN,)),
        "b_hh": u(ks[3], (3 * HIDDEN,)),
        "w_out": u(ks[4], (OUT_DIM, HIDDEN)),
        "b_out": u(ks[5], (OUT_DIM,)),
    }


def _reference(x, params):
    x = x.reshape(-1, SEQ_LEN, OBS_DIM).astype(jnp.float32)
    B = x.shape[0]
    H = HIDDEN
    w_ih, w_hh = params["w_ih"], params["w_hh"]
    b_ih, b_hh = params["b_ih"], params["b_hh"]

    def step(h, x_t):
        gi = x_t @ w_ih.T + b_ih
        gh = h @ w_hh.T + b_hh
        r = jax.nn.sigmoid(gi[:, :H] + gh[:, :H])
        z = jax.nn.sigmoid(gi[:, H:2 * H] + gh[:, H:2 * H])
        n = jnp.tanh(gi[:, 2 * H:] + r * gh[:, 2 * H:])
        return (1.0 - z) * n + z * h, None

    h0 = jnp.zeros((B, H), jnp.float32)
    h_last, _ = lax.scan(step, h0, jnp.transpose(x, (1, 0, 2)))
    return h_last @ params["w_out"].T + params["b_out"]


if __name__ == "__main__":
    key = jax.random.PRNGKey(0)
    k_x, k_p, k_x2 = jax.random.split(key, 3)
    params = init_params(k_p)

    # Primary small case (B=2): single 8-row tile, single sub-chain.
    x = jax.random.normal(k_x, (2, SEQ_LEN * OBS_DIM), jnp.float32)
    out = jax.block_until_ready(lstm_path_forward(x, params))
    ref = _reference(x, params)
    assert out.shape == (2, OUT_DIM)
    assert jnp.allclose(out, ref, atol=1e-2, rtol=1e-2), "mismatch vs JAX reference (B=2)"

    # Larger case (B=40): exercises 2 grid tiles (megacore on v7x), the
    # 2-sub-chain interleaved recurrence, and batch padding.
    x2 = jax.random.normal(k_x2, (40, SEQ_LEN * OBS_DIM), jnp.float32)
    out2 = jax.block_until_ready(lstm_path_forward(x2, params))
    ref2 = _reference(x2, params)
    assert out2.shape == (40, OUT_DIM)
    assert jnp.allclose(out2, ref2, atol=1e-2, rtol=1e-2), "mismatch vs JAX reference (B=40)"

    print("KERNEL_OK")
</pallas_src>

<mosaic_0001>
module attributes {stable_mosaic.version = 11 : i64} {
  func.func @_gru_recurrence_kernel(%arg0: i32, %arg1: memref<8x8x256xf32, #tpu.memory_space<vmem>>, %arg2: memref<128x256xbf16, #tpu.memory_space<vmem>>, %arg3: memref<1x128xf32, #tpu.memory_space<vmem>>, %arg4: memref<128x128xbf16, #tpu.memory_space<vmem>>, %arg5: memref<1x128xf32, #tpu.memory_space<vmem>>, %arg6: memref<8x128xf32, #tpu.memory_space<vmem>>) attributes {dimension_semantics = [#tpu.dimension_semantics<parallel>], iteration_bounds = array<i64: 1>, scalar_prefetch = 0 : i64, scratch_operands = 0 : i64, tpu.core_type = #tpu.core_type<tc>, window_params = [{transform_indices = @transform_0, window_bounds = array<i64: 8, 8, 256>}, {pipeline_mode = #tpu.pipeline_mode<synchronous>, transform_indices = @transform_1, window_bounds = array<i64: 128, 256>}, {pipeline_mode = #tpu.pipeline_mode<synchronous>, transform_indices = @transform_2, window_bounds = array<i64: 1, 128>}, {pipeline_mode = #tpu.pipeline_mode<synchronous>, transform_indices = @transform_3, window_bounds = array<i64: 128, 128>}, {pipeline_mode = #tpu.pipeline_mode<synchronous>, transform_indices = @transform_4, window_bounds = array<i64: 1, 128>}, {transform_indices = @transform_5, window_bounds = array<i64: 8, 128>}]} {
    %c0 = arith.constant 0 : index
    %c0_0 = arith.constant 0 : index
    %0 = vector.load %arg2[%c0, %c0_0] : memref<128x256xbf16, #tpu.memory_space<vmem>>, vector<128x256xbf16>
    %c0_1 = arith.constant 0 : index
    %c0_2 = arith.constant 0 : index
    %1 = vector.load %arg4[%c0_1, %c0_2] : memref<128x128xbf16, #tpu.memory_space<vmem>>, vector<128x128xbf16>
    %c0_3 = arith.constant 0 : index
    %c0_4 = arith.constant 0 : index
    %2 = vector.load %arg5[%c0_3, %c0_4] : memref<1x128xf32, #tpu.memory_space<vmem>>, vector<1x128xf32>
    %c0_5 = arith.constant 0 : index
    %c0_6 = arith.constant 0 : index
    %3 = vector.load %arg3[%c0_5, %c0_6] : memref<1x128xf32, #tpu.memory_space<vmem>>, vector<1x128xf32>
    %4 = vector.shape_cast %3 : vector<1x128xf32> to vector<1x128xf32>
    %5 = vector.broadcast %4 : vector<1x128xf32> to vector<8x128xf32>
    %cst = arith.constant 0.000000e+00 : f32
    %6 = vector.broadcast %cst : f32 to vector<8x128xf32>
    %c0_7 = arith.constant 0 : index
    %c0_8 = arith.constant 0 : index
    %c0_9 = arith.constant 0 : index
    %7 = vector.load %arg1[%c0_7, %c0_8, %c0_9] : memref<8x8x256xf32, #tpu.memory_space<vmem>>, vector<1x8x256xf32>
    %8 = vector.shape_cast %7 : vector<1x8x256xf32> to vector<8x256xf32>
    %9 = arith.truncf %6 : vector<8x128xf32> to vector<8x128xbf16>
    %cst_10 = arith.constant dense<0.000000e+00> : vector<8x256xf32>
    %10 = tpu.matmul %9, %0, %cst_10 {dimension_numbers = #tpu.dot_dimension_numbers<[1], [0], [0], [1], [0, 0, 1, 1], [], []>} : vector<8x128xbf16>, vector<128x256xbf16>, vector<8x256xf32> -> vector<8x256xf32>
    %11 = vector.extract_strided_slice %8 {offsets = [0, 0], sizes = [8, 128], strides = [1, 1]} : vector<8x256xf32> to vector<8x128xf32>
    %12 = vector.extract_strided_slice %10 {offsets = [0, 0], sizes = [8, 128], strides = [1, 1]} : vector<8x256xf32> to vector<8x128xf32>
    %13 = arith.addf %11, %12 : vector<8x128xf32>
    %14 = arith.negf %13 : vector<8x128xf32>
    %15 = math.exp %14 : vector<8x128xf32>
    %cst_11 = arith.constant 1.000000e+00 : f32
    %16 = vector.broadcast %cst_11 : f32 to vector<8x128xf32>
    %17 = arith.addf %16, %15 : vector<8x128xf32>
    %18 = arith.divf %16, %17 : vector<8x128xf32>
    %19 = vector.extract_strided_slice %8 {offsets = [0, 128], sizes = [8, 128], strides = [1, 1]} : vector<8x256xf32> to vector<8x128xf32>
    %20 = vector.extract_strided_slice %10 {offsets = [0, 128], sizes = [8, 128], strides = [1, 1]} : vector<8x256xf32> to vector<8x128xf32>
    %21 = arith.addf %20, %5 : vector<8x128xf32>
    %22 = arith.mulf %18, %21 : vector<8x128xf32>
    %23 = arith.addf %19, %22 : vector<8x128xf32>
    %24 = math.tanh %23 : vector<8x128xf32>
    %c64_i32 = arith.constant 64 : i32
    %25 = tpu.dynamic_rotate %18 by %c64_i32 dim 1 : vector<8x128xf32>, i32 -> vector<8x128xf32>
    %26 = arith.subf %6, %24 : vector<8x128xf32>
    %27 = arith.mulf %25, %26 : vector<8x128xf32>
    %28 = arith.addf %24, %27 : vector<8x128xf32>
    %c1 = arith.constant 1 : index
    %c0_12 = arith.constant 0 : index
    %c0_13 = arith.constant 0 : index
    %29 = vector.load %arg1[%c1, %c0_12, %c0_13] : memref<8x8x256xf32, #tpu.memory_space<vmem>>, vector<1x8x256xf32>
    %30 = vector.shape_cast %29 : vector<1x8x256xf32> to vector<8x256xf32>
    %31 = arith.truncf %28 : vector<8x128xf32> to vector<8x128xbf16>
    %cst_14 = arith.constant dense<0.000000e+00> : vector<8x256xf32>
    %32 = tpu.matmul %31, %0, %cst_14 {dimension_numbers = #tpu.dot_dimension_numbers<[1], [0], [0], [1], [0, 0, 1, 1], [], []>} : vector<8x128xbf16>, vector<128x256xbf16>, vector<8x256xf32> -> vector<8x256xf32>
    %33 = vector.extract_strided_slice %30 {offsets = [0, 0], sizes = [8, 128], strides = [1, 1]} : vector<8x256xf32> to vector<8x128xf32>
    %34 = vector.extract_strided_slice %32 {offsets = [0, 0], sizes = [8, 128], strides = [1, 1]} : vector<8x256xf32> to vector<8x128xf32>
    %35 = arith.addf %33, %34 : vector<8x128xf32>
    %36 = arith.negf %35 : vector<8x128xf32>
    %37 = math.exp %36 : vector<8x128xf32>
    %cst_15 = arith.constant 1.000000e+00 : f32
    %38 = vector.broadcast %cst_15 : f32 to vector<8x128xf32>
    %39 = arith.addf %38, %37 : vector<8x128xf32>
    %40 = arith.divf %38, %39 : vector<8x128xf32>
    %41 = vector.extract_strided_slice %30 {offsets = [0, 128], sizes = [8, 128], strides = [1, 1]} : vector<8x256xf32> to vector<8x128xf32>
    %42 = vector.extract_strided_slice %32 {offsets = [0, 128], sizes = [8, 128], strides = [1, 1]} : vector<8x256xf32> to vector<8x128xf32>
    %43 = arith.addf %42, %5 : vector<8x128xf32>
    %44 = arith.mulf %40, %43 : vector<8x128xf32>
    %45 = arith.addf %41, %44 : vector<8x128xf32>
    %46 = math.tanh %45 : vector<8x128xf32>
    %c64_i32_16 = arith.constant 64 : i32
    %47 = tpu.dynamic_rotate %40 by %c64_i32_16 dim 1 : vector<8x128xf32>, i32 -> vector<8x128xf32>
    %48 = arith.subf %28, %46 : vector<8x128xf32>
    %49 = arith.mulf %47, %48 : vector<8x128xf32>
    %50 = arith.addf %46, %49 : vector<8x128xf32>
    %c2 = arith.constant 2 : index
    %c0_17 = arith.constant 0 : index
    %c0_18 = arith.constant 0 : index
    %51 = vector.load %arg1[%c2, %c0_17, %c0_18] : memref<8x8x256xf32, #tpu.memory_space<vmem>>, vector<1x8x256xf32>
    %52 = vector.shape_cast %51 : vector<1x8x256xf32> to vector<8x256xf32>
    %53 = arith.truncf %50 : vector<8x128xf32> to vector<8x128xbf16>
    %cst_19 = arith.constant dense<0.000000e+00> : vector<8x256xf32>
    %54 = tpu.matmul %53, %0, %cst_19 {dimension_numbers = #tpu.dot_dimension_numbers<[1], [0], [0], [1], [0, 0, 1, 1], [], []>} : vector<8x128xbf16>, vector<128x256xbf16>, vector<8x256xf32> -> vector<8x256xf32>
    %55 = vector.extract_strided_slice %52 {offsets = [0, 0], sizes = [8, 128], strides = [1, 1]} : vector<8x256xf32> to vector<8x128xf32>
    %56 = vector.extract_strided_slice %54 {offsets = [0, 0], sizes = [8, 128], strides = [1, 1]} : vector<8x256xf32> to vector<8x128xf32>
    %57 = arith.addf %55, %56 : vector<8x128xf32>
    %58 = arith.negf %57 : vector<8x128xf32>
    %59 = math.exp %58 : vector<8x128xf32>
    %cst_20 = arith.constant 1.000000e+00 : f32
    %60 = vector.broadcast %cst_20 : f32 to vector<8x128xf32>
    %61 = arith.addf %60, %59 : vector<8x128xf32>
    %62 = arith.divf %60, %61 : vector<8x128xf32>
    %63 = vector.extract_strided_slice %52 {offsets = [0, 128], sizes = [8, 128], strides = [1, 1]} : vector<8x256xf32> to vector<8x128xf32>
    %64 = vector.extract_strided_slice %54 {offsets = [0, 128], sizes = [8, 128], strides = [1, 1]} : vector<8x256xf32> to vector<8x128xf32>
    %65 = arith.addf %64, %5 : vector<8x128xf32>
    %66 = arith.mulf %62, %65 : vector<8x128xf32>
    %67 = arith.addf %63, %66 : vector<8x128xf32>
    %68 = math.tanh %67 : vector<8x128xf32>
    %c64_i32_21 = arith.constant 64 : i32
    %69 = tpu.dynamic_rotate %62 by %c64_i32_21 dim 1 : vector<8x128xf32>, i32 -> vector<8x128xf32>
    %70 = arith.subf %50, %68 : vector<8x128xf32>
    %71 = arith.mulf %69, %70 : vector<8x128xf32>
    %72 = arith.addf %68, %71 : vector<8x128xf32>
    %c3 = arith.constant 3 : index
    %c0_22 = arith.constant 0 : index
    %c0_23 = arith.constant 0 : index
    %73 = vector.load %arg1[%c3, %c0_22, %c0_23] : memref<8x8x256xf32, #tpu.memory_space<vmem>>, vector<1x8x256xf32>
    %74 = vector.shape_cast %73 : vector<1x8x256xf32> to vector<8x256xf32>
    %75 = arith.truncf %72 : vector<8x128xf32> to vector<8x128xbf16>
    %cst_24 = arith.constant dense<0.000000e+00> : vector<8x256xf32>
    %76 = tpu.matmul %75, %0, %cst_24 {dimension_numbers = #tpu.dot_dimension_numbers<[1], [0], [0], [1], [0, 0, 1, 1], [], []>} : vector<8x128xbf16>, vector<128x256xbf16>, vector<8x256xf32> -> vector<8x256xf32>
    %77 = vector.extract_strided_slice %74 {offsets = [0, 0], sizes = [8, 128], strides = [1, 1]} : vector<8x256xf32> to vector<8x128xf32>
    %78 = vector.extract_strided_slice %76 {offsets = [0, 0], sizes = [8, 128], strides = [1, 1]} : vector<8x256xf32> to vector<8x128xf32>
    %79 = arith.addf %77, %78 : vector<8x128xf32>
    %80 = arith.negf %79 : vector<8x128xf32>
    %81 = math.exp %80 : vector<8x128xf32>
    %cst_25 = arith.constant 1.000000e+00 : f32
    %82 = vector.broadcast %cst_25 : f32 to vector<8x128xf32>
    %83 = arith.addf %82, %81 : vector<8x128xf32>
    %84 = arith.divf %82, %83 : vector<8x128xf32>
    %85 = vector.extract_strided_slice %74 {offsets = [0, 128], sizes = [8, 128], strides = [1, 1]} : vector<8x256xf32> to vector<8x128xf32>
    %86 = vector.extract_strided_slice %76 {offsets = [0, 128], sizes = [8, 128], strides = [1, 1]} : vector<8x256xf32> to vector<8x128xf32>
    %87 = arith.addf %86, %5 : vector<8x128xf32>
    %88 = arith.mulf %84, %87 : vector<8x128xf32>
    %89 = arith.addf %85, %88 : vector<8x128xf32>
    %90 = math.tanh %89 : vector<8x128xf32>
    %c64_i32_26 = arith.constant 64 : i32
    %91 = tpu.dynamic_rotate %84 by %c64_i32_26 dim 1 : vector<8x128xf32>, i32 -> vector<8x128xf32>
    %92 = arith.subf %72, %90 : vector<8x128xf32>
    %93 = arith.mulf %91, %92 : vector<8x128xf32>
    %94 = arith.addf %90, %93 : vector<8x128xf32>
    %c4 = arith.constant 4 : index
    %c0_27 = arith.constant 0 : index
    %c0_28 = arith.constant 0 : index
    %95 = vector.load %arg1[%c4, %c0_27, %c0_28] : memref<8x8x256xf32, #tpu.memory_space<vmem>>, vector<1x8x256xf32>
    %96 = vector.shape_cast %95 : vector<1x8x256xf32> to vector<8x256xf32>
    %97 = arith.truncf %94 : vector<8x128xf32> to vector<8x128xbf16>
    %cst_29 = arith.constant dense<0.000000e+00> : vector<8x256xf32>
    %98 = tpu.matmul %97, %0, %cst_29 {dimension_numbers = #tpu.dot_dimension_numbers<[1], [0], [0], [1], [0, 0, 1, 1], [], []>} : vector<8x128xbf16>, vector<128x256xbf16>, vector<8x256xf32> -> vector<8x256xf32>
    %99 = vector.extract_strided_slice %96 {offsets = [0, 0], sizes = [8, 128], strides = [1, 1]} : vector<8x256xf32> to vector<8x128xf32>
    %100 = vector.extract_strided_slice %98 {offsets = [0, 0], sizes = [8, 128], strides = [1, 1]} : vector<8x256xf32> to vector<8x128xf32>
    %101 = arith.addf %99, %100 : vector<8x128xf32>
    %102 = arith.negf %101 : vector<8x128xf32>
    %103 = math.exp %102 : vector<8x128xf32>
    %cst_30 = arith.constant 1.000000e+00 : f32
    %104 = vector.broadcast %cst_30 : f32 to vector<8x128xf32>
    %105 = arith.addf %104, %103 : vector<8x128xf32>
    %106 = arith.divf %104, %105 : vector<8x128xf32>
    %107 = vector.extract_strided_slice %96 {offsets = [0, 128], sizes = [8, 128], strides = [1, 1]} : vector<8x256xf32> to vector<8x128xf32>
    %108 = vector.extract_strided_slice %98 {offsets = [0, 128], sizes = [8, 128], strides = [1, 1]} : vector<8x256xf32> to vector<8x128xf32>
    %109 = arith.addf %108, %5 : vector<8x128xf32>
    %110 = arith.mulf %106, %109 : vector<8x128xf32>
    %111 = arith.addf %107, %110 : vector<8x128xf32>
    %112 = math.tanh %111 : vector<8x128xf32>
    %c64_i32_31 = arith.constant 64 : i32
    %113 = tpu.dynamic_rotate %106 by %c64_i32_31 dim 1 : vector<8x128xf32>, i32 -> vector<8x128xf32>
    %114 = arith.subf %94, %112 : vector<8x128xf32>
    %115 = arith.mulf %113, %114 : vector<8x128xf32>
    %116 = arith.addf %112, %115 : vector<8x128xf32>
    %c5 = arith.constant 5 : index
    %c0_32 = arith.constant 0 : index
    %c0_33 = arith.constant 0 : index
    %117 = vector.load %arg1[%c5, %c0_32, %c0_33] : memref<8x8x256xf32, #tpu.memory_space<vmem>>, vector<1x8x256xf32>
    %118 = vector.shape_cast %117 : vector<1x8x256xf32> to vector<8x256xf32>
    %119 = arith.truncf %116 : vector<8x128xf32> to vector<8x128xbf16>
    %cst_34 = arith.constant dense<0.000000e+00> : vector<8x256xf32>
    %120 = tpu.matmul %119, %0, %cst_34 {dimension_numbers = #tpu.dot_dimension_numbers<[1], [0], [0], [1], [0, 0, 1, 1], [], []>} : vector<8x128xbf16>, vector<128x256xbf16>, vector<8x256xf32> -> vector<8x256xf32>
    %121 = vector.extract_strided_slice %118 {offsets = [0, 0], sizes = [8, 128], strides = [1, 1]} : vector<8x256xf32> to vector<8x128xf32>
    %122 = vector.extract_strided_slice %120 {offsets = [0, 0], sizes = [8, 128], strides = [1, 1]} : vector<8x256xf32> to vector<8x128xf32>
    %123 = arith.addf %121, %122 : vector<8x128xf32>
    %124 = arith.negf %123 : vector<8x128xf32>
    %125 = math.exp %124 : vector<8x128xf32>
    %cst_35 = arith.constant 1.000000e+00 : f32
    %126 = vector.broadcast %cst_35 : f32 to vector<8x128xf32>
    %127 = arith.addf %126, %125 : vector<8x128xf32>
    %128 = arith.divf %126, %127 : vector<8x128xf32>
    %129 = vector.extract_strided_slice %118 {offsets = [0, 128], sizes = [8, 128], strides = [1, 1]} : vector<8x256xf32> to vector<8x128xf32>
    %130 = vector.extract_strided_slice %120 {offsets = [0, 128], sizes = [8, 128], strides = [1, 1]} : vector<8x256xf32> to vector<8x128xf32>
    %131 = arith.addf %130, %5 : vector<8x128xf32>
    %132 = arith.mulf %128, %131 : vector<8x128xf32>
    %133 = arith.addf %129, %132 : vector<8x128xf32>
    %134 = math.tanh %133 : vector<8x128xf32>
    %c64_i32_36 = arith.constant 64 : i32
    %135 = tpu.dynamic_rotate %128 by %c64_i32_36 dim 1 : vector<8x128xf32>, i32 -> vector<8x128xf32>
    %136 = arith.subf %116, %134 : vector<8x128xf32>
    %137 = arith.mulf %135, %136 : vector<8x128xf32>
    %138 = arith.addf %134, %137 : vector<8x128xf32>
    %c6 = arith.constant 6 : index
    %c0_37 = arith.constant 0 : index
    %c0_38 = arith.constant 0 : index
    %139 = vector.load %arg1[%c6, %c0_37, %c0_38] : memref<8x8x256xf32, #tpu.memory_space<vmem>>, vector<1x8x256xf32>
    %140 = vector.shape_cast %139 : vector<1x8x256xf32> to vector<8x256xf32>
    %141 = arith.truncf %138 : vector<8x128xf32> to vector<8x128xbf16>
    %cst_39 = arith.constant dense<0.000000e+00> : vector<8x256xf32>
    %142 = tpu.matmul %141, %0, %cst_39 {dimension_numbers = #tpu.dot_dimension_numbers<[1], [0], [0], [1], [0, 0, 1, 1], [], []>} : vector<8x128xbf16>, vector<128x256xbf16>, vector<8x256xf32> -> vector<8x256xf32>
    %143 = vector.extract_strided_slice %140 {offsets = [0, 0], sizes = [8, 128], strides = [1, 1]} : vector<8x256xf32> to vector<8x128xf32>
    %144 = vector.extract_strided_slice %142 {offsets = [0, 0], sizes = [8, 128], strides = [1, 1]} : vector<8x256xf32> to vector<8x128xf32>
    %145 = arith.addf %143, %144 : vector<8x128xf32>
    %146 = arith.negf %145 : vector<8x128xf32>
    %147 = math.exp %146 : vector<8x128xf32>
    %cst_40 = arith.constant 1.000000e+00 : f32
    %148 = vector.broadcast %cst_40 : f32 to vector<8x128xf32>
    %149 = arith.addf %148, %147 : vector<8x128xf32>
    %150 = arith.divf %148, %149 : vector<8x128xf32>
    %151 = vector.extract_strided_slice %140 {offsets = [0, 128], sizes = [8, 128], strides = [1, 1]} : vector<8x256xf32> to vector<8x128xf32>
    %152 = vector.extract_strided_slice %142 {offsets = [0, 128], sizes = [8, 128], strides = [1, 1]} : vector<8x256xf32> to vector<8x128xf32>
    %153 = arith.addf %152, %5 : vector<8x128xf32>
    %154 = arith.mulf %150, %153 : vector<8x128xf32>
    %155 = arith.addf %151, %154 : vector<8x128xf32>
    %156 = math.tanh %155 : vector<8x128xf32>
    %c64_i32_41 = arith.constant 64 : i32
    %157 = tpu.dynamic_rotate %150 by %c64_i32_41 dim 1 : vector<8x128xf32>, i32 -> vector<8x128xf32>
    %158 = arith.subf %138, %156 : vector<8x128xf32>
    %159 = arith.mulf %157, %158 : vector<8x128xf32>
    %160 = arith.addf %156, %159 : vector<8x128xf32>
    %c7 = arith.constant 7 : index
    %c0_42 = arith.constant 0 : index
    %c0_43 = arith.constant 0 : index
    %161 = vector.load %arg1[%c7, %c0_42, %c0_43] : memref<8x8x256xf32, #tpu.memory_space<vmem>>, vector<1x8x256xf32>
    %162 = vector.shape_cast %161 : vector<1x8x256xf32> to vector<8x256xf32>
    %163 = arith.truncf %160 : vector<8x128xf32> to vector<8x128xbf16>
    %cst_44 = arith.constant dense<0.000000e+00> : vector<8x256xf32>
    %164 = tpu.matmul %163, %0, %cst_44 {dimension_numbers = #tpu.dot_dimension_numbers<[1], [0], [0], [1], [0, 0, 1, 1], [], []>} : vector<8x128xbf16>, vector<128x256xbf16>, vector<8x256xf32> -> vector<8x256xf32>
    %165 = vector.extract_strided_slice %162 {offsets = [0, 0], sizes = [8, 128], strides = [1, 1]} : vector<8x256xf32> to vector<8x128xf32>
    %166 = vector.extract_strided_slice %164 {offsets = [0, 0], sizes = [8, 128], strides = [1, 1]} : vector<8x256xf32> to vector<8x128xf32>
    %167 = arith.addf %165, %166 : vector<8x128xf32>
    %168 = arith.negf %167 : vector<8x128xf32>
    %169 = math.exp %168 : vector<8x128xf32>
    %cst_45 = arith.constant 1.000000e+00 : f32
    %170 = vector.broadcast %cst_45 : f32 to vector<8x128xf32>
    %171 = arith.addf %170, %169 : vector<8x128xf32>
    %172 = arith.divf %170, %171 : vector<8x128xf32>
    %173 = vector.extract_strided_slice %162 {offsets = [0, 128], sizes = [8, 128], strides = [1, 1]} : vector<8x256xf32> to vector<8x128xf32>
    %174 = vector.extract_strided_slice %164 {offsets = [0, 128], sizes = [8, 128], strides = [1, 1]} : vector<8x256xf32> to vector<8x128xf32>
    %175 = arith.addf %174, %5 : vector<8x128xf32>
    %176 = arith.mulf %172, %175 : vector<8x128xf32>
    %177 = arith.addf %173, %176 : vector<8x128xf32>
    %178 = math.tanh %177 : vector<8x128xf32>
    %c64_i32_46 = arith.constant 64 : i32
    %179 = tpu.dynamic_rotate %172 by %c64_i32_46 dim 1 : vector<8x128xf32>, i32 -> vector<8x128xf32>
    %180 = arith.subf %160, %178 : vector<8x128xf32>
    %181 = arith.mulf %179, %180 : vector<8x128xf32>
    %182 = arith.addf %178, %181 : vector<8x128xf32>
    %183 = arith.truncf %182 : vector<8x128xf32> to vector<8x128xbf16>
    %cst_47 = arith.constant dense<0.000000e+00> : vector<8x128xf32>
    %184 = tpu.matmul %183, %1, %cst_47 {dimension_numbers = #tpu.dot_dimension_numbers<[1], [0], [0], [1], [0, 0, 1, 1], [], []>} : vector<8x128xbf16>, vector<128x128xbf16>, vector<8x128xf32> -> vector<8x128xf32>
    %185 = vector.broadcast %2 : vector<1x128xf32> to vector<8x128xf32>
    %186 = arith.addf %184, %185 : vector<8x128xf32>
    %c0_48 = arith.constant 0 : index
    %c0_49 = arith.constant 0 : index
    %187 = vector.load %arg6[%c0_48, %c0_49] : memref<8x128xf32, #tpu.memory_space<vmem>>, vector<8x128xf32>
    tpu.vector_store %arg6[%c0_48, %c0_49], %186 {strides = array<i32>} : memref<8x128xf32, #tpu.memory_space<vmem>>, vector<8x128xf32>,
    return
  }
  func.func @transform_0(%arg0: i32) -> (i32, i32, i32) {
    %c0_i32 = arith.constant 0 : i32
    %c0_i32_0 = arith.constant 0 : i32
    %c0_i32_1 = arith.constant 0 : i32
    return %c0_i32, %arg0, %c0_i32_0 : i32, i32, i32
  }
  func.func @transform_1(%arg0: i32) -> (i32, i32) {
    %c0_i32 = arith.constant 0 : i32
    %c0_i32_0 = arith.constant 0 : i32
    %c0_i32_1 = arith.constant 0 : i32
    return %c0_i32, %c0_i32_0 : i32, i32
  }
  func.func @transform_2(%arg0: i32) -> (i32, i32) {
    %c0_i32 = arith.constant 0 : i32
    %c0_i32_0 = arith.constant 0 : i32
    %c0_i32_1 = arith.constant 0 : i32
    return %c0_i32, %c0_i32_0 : i32, i32
  }
  func.func @transform_3(%arg0: i32) -> (i32, i32) {
    %c0_i32 = arith.constant 0 : i32
    %c0_i32_0 = arith.constant 0 : i32
    %c0_i32_1 = arith.constant 0 : i32
    return %c0_i32, %c0_i32_0 : i32, i32
  }
  func.func @transform_4(%arg0: i32) -> (i32, i32) {
    %c0_i32 = arith.constant 0 : i32
    %c0_i32_0 = arith.constant 0 : i32
    %c0_i32_1 = arith.constant 0 : i32
    return %c0_i32, %c0_i32_0 : i32, i32
  }
  func.func @transform_5(%arg0: i32) -> (i32, i32) {
    %c0_i32 = arith.constant 0 : i32
    %c0_i32_0 = arith.constant 0 : i32
    return %arg0, %c0_i32 : i32, i32
  }
}

</mosaic_0001>

<llo_original>
// kernel: lstm_path_forward.1
$region0: #{lstm_path_forward.1}
  #allocation0 [shape = 'u32[]', space=smem, size = 0x4, offset = 0x4, fixed_abs, tag = 'smem constant byte address 0x4 - core index']
  #allocation1 [shape = 'u32[144,128]{1,0:T(1,128)}', space=vmem, size = 0x12000, scoped, tag = 'internal scratch']
  %s0 = inlined_call_operand.vmem [shape: f32[8,8,256], index: 0, kind: input, shape index: {}]
  %s1 = inlined_call_operand.vmem [shape: bf16[128,256], index: 1, kind: input, shape index: {}]
  %s2 = inlined_call_operand.vmem [shape: f32[1,128], index: 2, kind: input, shape index: {}]
  %s3 = inlined_call_operand.vmem [shape: bf16[128,128], index: 3, kind: input, shape index: {}]
  %s4 = inlined_call_operand.vmem [shape: f32[1,128], index: 4, kind: input, shape index: {}]
  %s5 = inlined_call_operand.vmem [shape: f32[8,128], index: 5, kind: output, shape index: {}]
  %s6 = sld [smem:[#allocation0]]
  $region30: #{lstm_path_forward.1} parent=0
    _
  %s8 = ssub.s32 1, %s6
  %s9 = scalar_select 0, %s8, %s6
  // Predicated region
  $region2: #{lstm_path_forward.1} parent=0 // pred_check
    _
  $region3: #{lstm_path_forward.1} parent=0 // pred_check_branch
    %11 = sbr.rel (0) target = $region5
  $region4: #{lstm_path_forward.1} parent=0 // pred_region
    _
  $region5: #{lstm_path_forward.1} parent=0 // pred_fallthru
    _
  // Predicated region
  $region6: #{lstm_path_forward.1} parent=0 // pred_check
    _
  $region7: #{lstm_path_forward.1} parent=0 // pred_check_branch
    %13 = sbr.rel (0) target = $region9
  $region8: #{lstm_path_forward.1} parent=0 // pred_region
    _
  $region9: #{lstm_path_forward.1} parent=0 // pred_fallthru
    _
  // Predicated region
  $region10: #{lstm_path_forward.1} parent=0 // pred_check
    _
  $region11: #{lstm_path_forward.1} parent=0 // pred_check_branch
    %15 = sbr.rel (0) target = $region13
  $region12: #{lstm_path_forward.1} parent=0 // pred_region
    _
  $region13: #{lstm_path_forward.1} parent=0 // pred_fallthru
    _
  // Predicated region
  $region14: #{lstm_path_forward.1} parent=0 // pred_check
    _
  $region15: #{lstm_path_forward.1} parent=0 // pred_check_branch
    %17 = sbr.rel (0) target = $region17
  $region16: #{lstm_path_forward.1} parent=0 // pred_region
    _
  $region17: #{lstm_path_forward.1} parent=0 // pred_fallthru
    _
  // Predicated region
  $region18: #{lstm_path_forward.1} parent=0 // pred_check
    _
  $region19: #{lstm_path_forward.1} parent=0 // pred_check_branch
    %19 = sbr.rel (0) target = $region21
  $region20: #{lstm_path_forward.1} parent=0 // pred_region
    _
  $region21: #{lstm_path_forward.1} parent=0 // pred_fallthru
    _
  %v21 = vld [vmem:[%s1] sm:$0xff]
  %v22 = vld [vmem:[%s1 + $0x8] sm:$0xff]
  %v23 = vld [vmem:[%s1 + $0x10] sm:$0xff]
  %v24 = vld [vmem:[%s1 + $0x18] sm:$0xff]
  %v25 = vld [vmem:[%s1 + $0x20] sm:$0xff]
  %v26 = vld [vmem:[%s1 + $0x28] sm:$0xff]
  %v27 = vld [vmem:[%s1 + $0x30] sm:$0xff]
  %v28 = vld [vmem:[%s1 + $0x38] sm:$0xff]
  %v29 = vld [vmem:[%s1 + $0x40] sm:$0xff]
  %v30 = vld [vmem:[%s1 + $0x48] sm:$0xff]
  %v31 = vld [vmem:[%s1 + $0x50] sm:$0xff]
  %v32 = vld [vmem:[%s1 + $0x58] sm:$0xff]
  %v33 = vld [vmem:[%s1 + $0x60] sm:$0xff]
  %v34 = vld [vmem:[%s1 + $0x68] sm:$0xff]
  %v35 = vld [vmem:[%s1 + $0x70] sm:$0xff]
  %v36 = vld [vmem:[%s1 + $0x78] sm:$0xff]
  %v37 = vld [vmem:[%s3] sm:$0xf]
  %v38 = vld [vmem:[%s3 + $0x4] sm:$0xf]
  %v39 = vld [vmem:[%s3 + $0x8] sm:$0xf]
  %v40 = vld [vmem:[%s3 + $0xc] sm:$0xf]
  %v41 = vld [vmem:[%s3 + $0x10] sm:$0xf]
  %v42 = vld [vmem:[%s3 + $0x14] sm:$0xf]
  %v43 = vld [vmem:[%s3 + $0x18] sm:$0xf]
  %v44 = vld [vmem:[%s3 + $0x1c] sm:$0xf]
  %v45 = vld [vmem:[%s3 + $0x20] sm:$0xf]
  %v46 = vld [vmem:[%s3 + $0x24] sm:$0xf]
  %v47 = vld [vmem:[%s3 + $0x28] sm:$0xf]
  %v48 = vld [vmem:[%s3 + $0x2c] sm:$0xf]
  %v49 = vld [vmem:[%s3 + $0x30] sm:$0xf]
  %v50 = vld [vmem:[%s3 + $0x34] sm:$0xf]
  %v51 = vld [vmem:[%s3 + $0x38] sm:$0xf]
  %v52 = vld [vmem:[%s3 + $0x3c] sm:$0xf]
  %v53 = vld [vmem:[%s4] sm:$0x1]
  %v54 = vld [vmem:[%s2] sm:$0x1]
  %v56 = vlaneseq
  %v57 = vshrl.u32 %v56, 7
  %v58 = vsub.s32 0, %v57
  %v59 = vrot.slane %v54, %v58
  %v61 = vld [vmem:[%s0] sm:$0xff]
  %v62 = vld [vmem:[%s0 + $0x8] sm:$0xff]
  %v79 = vunpack.c.l.b16 %v21
  %v80 = vunpack.c.h.b16 %v21
  %v81 = vunpack.c.l.b16 %v22
  %v82 = vunpack.c.h.b16 %v22
  %v83 = vunpack.c.l.b16 %v23
  %v84 = vunpack.c.h.b16 %v23
  %v85 = vunpack.c.l.b16 %v24
  %v86 = vunpack.c.h.b16 %v24
  %v87 = vunpack.c.l.b16 %v25
  %v88 = vunpack.c.h.b16 %v25
  %v89 = vunpack.c.l.b16 %v26
  %v90 = vunpack.c.h.b16 %v26
  %v91 = vunpack.c.l.b16 %v27
  %v92 = vunpack.c.h.b16 %v27
  %v93 = vunpack.c.l.b16 %v28
  %v94 = vunpack.c.h.b16 %v28
  %v95 = vunpack.c.l.b16 %v29
  %v96 = vunpack.c.h.b16 %v29
  %v97 = vunpack.c.l.b16 %v30
  %v98 = vunpack.c.h.b16 %v30
  %v99 = vunpack.c.l.b16 %v31
  %v100 = vunpack.c.h.b16 %v31
  %v101 = vunpack.c.l.b16 %v32
  %v102 = vunpack.c.h.b16 %v32
  %v103 = vunpack.c.l.b16 %v33
  %v104 = vunpack.c.h.b16 %v33
  %v105 = vunpack.c.l.b16 %v34
  %v106 = vunpack.c.h.b16 %v34
  %v107 = vunpack.c.l.b16 %v35
  %v108 = vunpack.c.h.b16 %v35
  %v109 = vunpack.c.l.b16 %v36
  %v110 = vunpack.c.h.b16 %v36
  %v111 = vpack.c.b16 %v81, %v79
  %v112 = vpack.c.b16 %v82, %v80
  %v113 = vpack.c.b16 %v85, %v83
  %v114 = vpack.c.b16 %v86, %v84
  %v115 = vpack.c.b16 %v89, %v87
  %v116 = vpack.c.b16 %v90, %v88
  %v117 = vpack.c.b16 %v93, %v91
  %v118 = vpack.c.b16 %v94, %v92
  %v119 = vpack.c.b16 %v97, %v95
  %v120 = vpack.c.b16 %v98, %v96
  %v121 = vpack.c.b16 %v101, %v99
  %v122 = vpack.c.b16 %v102, %v100
  %v123 = vpack.c.b16 %v105, %v103
  %v124 = vpack.c.b16 %v106, %v104
  %v125 = vpack.c.b16 %v109, %v107
  %v126 = vpack.c.b16 %v110, %v108
  %143 = vmatprep.subr.bf16.mxu0 %v112
  %144 = vmatpush1.bf16.msra.mxu0 %v111
  %145 = vmatprep.subr.bf16.mxu0 %v114
  %146 = vmatpush1.bf16.msra.mxu0 %v113
  %147 = vmatprep.subr.bf16.mxu0 %v116
  %148 = vmatpush1.bf16.msra.mxu0 %v115
  %149 = vmatprep.subr.bf16.mxu0 %v118
  %150 = vmatpush1.bf16.msra.mxu0 %v117
  %151 = vmatprep.subr.bf16.mxu0 %v120
  %152 = vmatpush1.bf16.msra.mxu0 %v119
  %153 = vmatprep.subr.bf16.mxu0 %v122
  %154 = vmatpush1.bf16.msra.mxu0 %v121
  %155 = vmatprep.subr.bf16.mxu0 %v124
  %156 = vmatpush1.bf16.msra.mxu0 %v123
  %157 = vmatprep.subr.bf16.mxu0 %v126
  %158 = vmatpush1.bf16.msra.mxu0 %v125
  %159 = vmatprep.subr.bf16.mxu0 0
  %160 = vmatpush1.bf16.msra.mxu0 0
  %161 = vmatprep.subr.bf16.mxu0 0
  %162 = vmatpush1.bf16.msra.mxu0 0
  %163 = vmatprep.subr.bf16.mxu0 0
  %164 = vmatpush1.bf16.msra.mxu0 0
  %165 = vmatprep.subr.bf16.mxu0 0
  %166 = vmatpush1.bf16.msra.mxu0 0
  %167 = vmatprep.subr.bf16.mxu0 0
  %168 = vmatpush1.bf16.msra.mxu0 0
  %169 = vmatprep.subr.bf16.mxu0 0
  %170 = vmatpush1.bf16.msra.mxu0 0
  %171 = vmatprep.subr.bf16.mxu0 0
  %172 = vmatpush1.bf16.msra.mxu0 0
  %173 = vmatprep.subr.bf16.mxu0 0
  %174 = vmatpush1.bf16.msra.mxu0 0
  %175 = vmatprep.mubr.bf16.mxu0 0
  %176 = vmatmul.mubr.bf16.gmra.mrb[0].mxu0 0
  %v177 = vpop.f32.mrb[0].mxu0
  %v178 = vadd.f32 0.0, %v177
  %v179 = vpop.f32.mrb[0].mxu0
  %v180 = vadd.f32 0.0, %v179
  %v181 = vpop.f32.mrb[0].mxu0
  %v182 = vpop.f32.mrb[0].mxu0
  %183 = vdwg.mxu0
  %v184 = vadd.f32 %v61, %v178
  %v185 = vxor.u32 %v184, 2147483648
  %v186 = vmul.f32 %v185, 1.442695
  %v187 = vpow.pop %v186
  %v188 = vadd.f32 %v187, 1.0
  %v189 = vrcp.pop %v188
  %v190 = vmul.f32 1.0, %v189
  %v191 = vadd.f32 %v180, %v59
  %v192 = vmul.f32 %v190, %v191
  %v193 = vadd.f32 %v62, %v192
  %v194 = vtanh.pop %v193
  %195 = vrot.lane.b32.xlu0 %v190, 64
  %v196 = vpop.permute.xlu0 %195
  %v197 = vsub.f32 0.0, %v194
  %v198 = vmul.f32 %v196, %v197
  %v199 = vadd.f32 %v194, %v198
  %s200 = scalar_lea.vmem %s0, 16
  %v201 = vld [vmem:[%s200] sm:$0xff]
  %v202 = vld [vmem:[%s200 + $0x8] sm:$0xff]
  %v203 = vpack.c.bf16 %v199, %v199
  %204 = vmatprep.subr.bf16.mxu0 %v112
  %205 = vmatpush1.bf16.msra.mxu0 %v111
  %206 = vmatprep.subr.bf16.mxu0 %v114
  %207 = vmatpush1.bf16.msra.mxu0 %v113
  %208 = vmatprep.subr.bf16.mxu0 %v116
  %209 = vmatpush1.bf16.msra.mxu0 %v115
  %210 = vmatprep.subr.bf16.mxu0 %v118
  %211 = vmatpush1.bf16.msra.mxu0 %v117
  %212 = vmatprep.subr.bf16.mxu0 %v120
  %213 = vmatpush1.bf16.msra.mxu0 %v119
  %214 = vmatprep.subr.bf16.mxu0 %v122
  %215 = vmatpush1.bf16.msra.mxu0 %v121
  %216 = vmatprep.subr.bf16.mxu0 %v124
  %217 = vmatpush1.bf16.msra.mxu0 %v123
  %218 = vmatprep.subr.bf16.mxu0 %v126
  %219 = vmatpush1.bf16.msra.mxu0 %v125
  %220 = vmatprep.subr.bf16.mxu0 0
  %221 = vmatpush1.bf16.msra.mxu0 0
  %222 = vmatprep.subr.bf16.mxu0 0
  %223 = vmatpush1.bf16.msra.mxu0 0
  %224 = vmatprep.subr.bf16.mxu0 0
  %225 = vmatpush1.bf16.msra.mxu0 0
  %226 = vmatprep.subr.bf16.mxu0 0
  %227 = vmatpush1.bf16.msra.mxu0 0
  %228 = vmatprep.subr.bf16.mxu0 0
  %229 = vmatpush1.bf16.msra.mxu0 0
  %230 = vmatprep.subr.bf16.mxu0 0
  %231 = vmatpush1.bf16.msra.mxu0 0
  %232 = vmatprep.subr.bf16.mxu0 0
  %233 = vmatpush1.bf16.msra.mxu0 0
  %234 = vmatprep.subr.bf16.mxu0 0
  %235 = vmatpush1.bf16.msra.mxu0 0
  %236 = vmatprep.mubr.bf16.mxu0 0
  %237 = vmatmul.mubr.bf16.gmra.mrb[0].mxu0 %v203
  %v238 = vpop.f32.mrb[0].mxu0
  %v239 = vadd.f32 0.0, %v238
  %v240 = vpop.f32.mrb[0].mxu0
  %v241 = vadd.f32 0.0, %v240
  %v242 = vpop.f32.mrb[0].mxu0
  %v243 = vpop.f32.mrb[0].mxu0
  %244 = vdwg.mxu0
  %v245 = vadd.f32 %v201, %v239
  %v246 = vxor.u32 %v245, 2147483648
  %v247 = vmul.f32 %v246, 1.442695
  %v248 = vpow.pop %v247
  %v249 = vadd.f32 %v248, 1.0
  %v250 = vrcp.pop %v249
  %v251 = vmul.f32 1.0, %v250
  %v252 = vadd.f32 %v241, %v59
  %v253 = vmul.f32 %v251, %v252
  %v254 = vadd.f32 %v202, %v253
  %v255 = vtanh.pop %v254
  %256 = vrot.lane.b32.xlu0 %v251, 64
  %v257 = vpop.permute.xlu0 %256
  %v258 = vsub.f32 %v199, %v255
  %v259 = vmul.f32 %v257, %v258
  %v260 = vadd.f32 %v255, %v259
  %s261 = scalar_lea.vmem %s0, 32
  %v262 = vld [vmem:[%s261] sm:$0xff]
  %v263 = vld [vmem:[%s261 + $0x8] sm:$0xff]
  %v264 = vpack.c.bf16 %v260, %v260
  %265 = vmatprep.subr.bf16.mxu0 %v112
  %266 = vmatpush1.bf16.msra.mxu0 %v111
  %267 = vmatprep.subr.bf16.mxu0 %v114
  %268 = vmatpush1.bf16.msra.mxu0 %v113
  %269 = vmatprep.subr.bf16.mxu0 %v116
  %270 = vmatpush1.bf16.msra.mxu0 %v115
  %271 = vmatprep.subr.bf16.mxu0 %v118
  %272 = vmatpush1.bf16.msra.mxu0 %v117
  %273 = vmatprep.subr.bf16.mxu0 %v120
  %274 = vmatpush1.bf16.msra.mxu0 %v119
  %275 = vmatprep.subr.bf16.mxu0 %v122
  %276 = vmatpush1.bf16.msra.mxu0 %v121
  %277 = vmatprep.subr.bf16.mxu0 %v124
  %278 = vmatpush1.bf16.msra.mxu0 %v123
  %279 = vmatprep.subr.bf16.mxu0 %v126
  %280 = vmatpush1.bf16.msra.mxu0 %v125
  %281 = vmatprep.subr.bf16.mxu0 0
  %282 = vmatpush1.bf16.msra.mxu0 0
  %283 = vmatprep.subr.bf16.mxu0 0
  %284 = vmatpush1.bf16.msra.mxu0 0
  %285 = vmatprep.subr.bf16.mxu0 0
  %286 = vmatpush1.bf16.msra.mxu0 0
  %287 = vmatprep.subr.bf16.mxu0 0
  %288 = vmatpush1.bf16.msra.mxu0 0
  %289 = vmatprep.subr.bf16.mxu0 0
  %290 = vmatpush1.bf16.msra.mxu0 0
  %291 = vmatprep.subr.bf16.mxu0 0
  %292 = vmatpush1.bf16.msra.mxu0 0
  %293 = vmatprep.subr.bf16.mxu0 0
  %294 = vmatpush1.bf16.msra.mxu0 0
  %295 = vmatprep.subr.bf16.mxu0 0
  %296 = vmatpush1.bf16.msra.mxu0 0
  %297 = vmatprep.mubr.bf16.mxu0 0
  %298 = vmatmul.mubr.bf16.gmra.mrb[0].mxu0 %v264
  %v299 = vpop.f32.mrb[0].mxu0
  %v300 = vadd.f32 0.0, %v299
  %v301 = vpop.f32.mrb[0].mxu0
  %v302 = vadd.f32 0.0, %v301
  %v303 = vpop.f32.mrb[0].mxu0
  %v304 = vpop.f32.mrb[0].mxu0
  %305 = vdwg.mxu0
  %v306 = vadd.f32 %v262, %v300
  %v307 = vxor.u32 %v306, 2147483648
  %v308 = vmul.f32 %v307, 1.442695
  %v309 = vpow.pop %v308
  %v310 = vadd.f32 %v309, 1.0
  %v311 = vrcp.pop %v310
  %v312 = vmul.f32 1.0, %v311
  %v313 = vadd.f32 %v302, %v59
  %v314 = vmul.f32 %v312, %v313
  %v315 = vadd.f32 %v263, %v314
  %v316 = vtanh.pop %v315
  %317 = vrot.lane.b32.xlu0 %v312, 64
  %v318 = vpop.permute.xlu0 %317
  %v319 = vsub.f32 %v260, %v316
  %v320 = vmul.f32 %v318, %v319
  %v321 = vadd.f32 %v316, %v320
  %s322 = scalar_lea.vmem %s0, 48
  %v323 = vld [vmem:[%s322] sm:$0xff]
  %v324 = vld [vmem:[%s322 + $0x8] sm:$0xff]
  %v325 = vpack.c.bf16 %v321, %v321
  %326 = vmatprep.subr.bf16.mxu0 %v112
  %327 = vmatpush1.bf16.msra.mxu0 %v111
  %328 = vmatprep.subr.bf16.mxu0 %v114
  %329 = vmatpush1.bf16.msra.mxu0 %v113
  %330 = vmatprep.subr.bf16.mxu0 %v116
  %331 = vmatpush1.bf16.msra.mxu0 %v115
  %332 = vmatprep.subr.bf16.mxu0 %v118
  %333 = vmatpush1.bf16.msra.mxu0 %v117
  %334 = vmatprep.subr.bf16.mxu0 %v120
  %335 = vmatpush1.bf16.msra.mxu0 %v119
  %336 = vmatprep.subr.bf16.mxu0 %v122
  %337 = vmatpush1.bf16.msra.mxu0 %v121
  %338 = vmatprep.subr.bf16.mxu0 %v124
  %339 = vmatpush1.bf16.msra.mxu0 %v123
  %340 = vmatprep.subr.bf16.mxu0 %v126
  %341 = vmatpush1.bf16.msra.mxu0 %v125
  %342 = vmatprep.subr.bf16.mxu0 0
  %343 = vmatpush1.bf16.msra.mxu0 0
  %344 = vmatprep.subr.bf16.mxu0 0
  %345 = vmatpush1.bf16.msra.mxu0 0
  %346 = vmatprep.subr.bf16.mxu0 0
  %347 = vmatpush1.bf16.msra.mxu0 0
  %348 = vmatprep.subr.bf16.mxu0 0
  %349 = vmatpush1.bf16.msra.mxu0 0
  %350 = vmatprep.subr.bf16.mxu0 0
  %351 = vmatpush1.bf16.msra.mxu0 0
  %352 = vmatprep.subr.bf16.mxu0 0
  %353 = vmatpush1.bf16.msra.mxu0 0
  %354 = vmatprep.subr.bf16.mxu0 0
  %355 = vmatpush1.bf16.msra.mxu0 0
  %356 = vmatprep.subr.bf16.mxu0 0
  %357 = vmatpush1.bf16.msra.mxu0 0
  %358 = vmatprep.mubr.bf16.mxu0 0
  %359 = vmatmul.mubr.bf16.gmra.mrb[0].mxu0 %v325
  %v360 = vpop.f32.mrb[0].mxu0
  %v361 = vadd.f32 0.0, %v360
  %v362 = vpop.f32.mrb[0].mxu0
  %v363 = vadd.f32 0.0, %v362
  %v364 = vpop.f32.mrb[0].mxu0
  %v365 = vpop.f32.mrb[0].mxu0
  %366 = vdwg.mxu0
  %v367 = vadd.f32 %v323, %v361
  %v368 = vxor.u32 %v367, 2147483648
  %v369 = vmul.f32 %v368, 1.442695
  %v370 = vpow.pop %v369
  %v371 = vadd.f32 %v370, 1.0
  %v372 = vrcp.pop %v371
  %v373 = vmul.f32 1.0, %v372
  %v374 = vadd.f32 %v363, %v59
  %v375 = vmul.f32 %v373, %v374
  %v376 = vadd.f32 %v324, %v375
  %v377 = vtanh.pop %v376
  %378 = vrot.lane.b32.xlu0 %v373, 64
  %v379 = vpop.permute.xlu0 %378
  %v380 = vsub.f32 %v321, %v377
  %v381 = vmul.f32 %v379, %v380
  %v382 = vadd.f32 %v377, %v381
  %s383 = scalar_lea.vmem %s0, 64
  %v384 = vld [vmem:[%s383] sm:$0xff]
  %v385 = vld [vmem:[%s383 + $0x8] sm:$0xff]
  %v386 = vpack.c.bf16 %v382, %v382
  %387 = vmatprep.subr.bf16.mxu0 %v112
  %388 = vmatpush1.bf16.msra.mxu0 %v111
  %389 = vmatprep.subr.bf16.mxu0 %v114
  %390 = vmatpush1.bf16.msra.mxu0 %v113
  %391 = vmatprep.subr.bf16.mxu0 %v116
  %392 = vmatpush1.bf16.msra.mxu0 %v115
  %393 = vmatprep.subr.bf16.mxu0 %v118
  %394 = vmatpush1.bf16.msra.mxu0 %v117
  %395 = vmatprep.subr.bf16.mxu0 %v120
  %396 = vmatpush1.bf16.msra.mxu0 %v119
  %397 = vmatprep.subr.bf16.mxu0 %v122
  %398 = vmatpush1.bf16.msra.mxu0 %v121
  %399 = vmatprep.subr.bf16.mxu0 %v124
  %400 = vmatpush1.bf16.msra.mxu0 %v123
  %401 = vmatprep.subr.bf16.mxu0 %v126
  %402 = vmatpush1.bf16.msra.mxu0 %v125
  %403 = vmatprep.subr.bf16.mxu0 0
  %404 = vmatpush1.bf16.msra.mxu0 0
  %405 = vmatprep.subr.bf16.mxu0 0
  %406 = vmatpush1.bf16.msra.mxu0 0
  %407 = vmatprep.subr.bf16.mxu0 0
  %408 = vmatpush1.bf16.msra.mxu0 0
  %409 = vmatprep.subr.bf16.mxu0 0
  %410 = vmatpush1.bf16.msra.mxu0 0
  %411 = vmatprep.subr.bf16.mxu0 0
  %412 = vmatpush1.bf16.msra.mxu0 0
  %413 = vmatprep.subr.bf16.mxu0 0
  %414 = vmatpush1.bf16.msra.mxu0 0
  %415 = vmatprep.subr.bf16.mxu0 0
  %416 = vmatpush1.bf16.msra.mxu0 0
  %417 = vmatprep.subr.bf16.mxu0 0
  %418 = vmatpush1.bf16.msra.mxu0 0
  %419 = vmatprep.mubr.bf16.mxu0 0
  %420 = vmatmul.mubr.bf16.gmra.mrb[0].mxu0 %v386
  %v421 = vpop.f32.mrb[0].mxu0
  %v422 = vadd.f32 0.0, %v421
  %v423 = vpop.f32.mrb[0].mxu0
  %v424 = vadd.f32 0.0, %v423
  %v425 = vpop.f32.mrb[0].mxu0
  %v426 = vpop.f32.mrb[0].mxu0
  %427 = vdwg.mxu0
  %v428 = vadd.f32 %v384, %v422
  %v429 = vxor.u32 %v428, 2147483648
  %v430 = vmul.f32 %v429, 1.442695
  %v431 = vpow.pop %v430
  %v432 = vadd.f32 %v431, 1.0
  %v433 = vrcp.pop %v432
  %v434 = vmul.f32 1.0, %v433
  %v435 = vadd.f32 %v424, %v59
  %v436 = vmul.f32 %v434, %v435
  %v437 = vadd.f32 %v385, %v436
  %v438 = vtanh.pop %v437
  %439 = vrot.lane.b32.xlu0 %v434, 64
  %v440 = vpop.permute.xlu0 %439
  %v441 = vsub.f32 %v382, %v438
  %v442 = vmul.f32 %v440, %v441
  %v443 = vadd.f32 %v438, %v442
  %s444 = scalar_lea.vmem %s0, 80
  %v445 = vld [vmem:[%s444] sm:$0xff]
  %v446 = vld [vmem:[%s444 + $0x8] sm:$0xff]
  %v447 = vpack.c.bf16 %v443, %v443
  %448 = vmatprep.subr.bf16.mxu0 %v112
  %449 = vmatpush1.bf16.msra.mxu0 %v111
  %450 = vmatprep.subr.bf16.mxu0 %v114
  %451 = vmatpush1.bf16.msra.mxu0 %v113
  %452 = vmatprep.subr.bf16.mxu0 %v116
  %453 = vmatpush1.bf16.msra.mxu0 %v115
  %454 = vmatprep.subr.bf16.mxu0 %v118
  %455 = vmatpush1.bf16.msra.mxu0 %v117
  %456 = vmatprep.subr.bf16.mxu0 %v120
  %457 = vmatpush1.bf16.msra.mxu0 %v119
  %458 = vmatprep.subr.bf16.mxu0 %v122
  %459 = vmatpush1.bf16.msra.mxu0 %v121
  %460 = vmatprep.subr.bf16.mxu0 %v124
  %461 = vmatpush1.bf16.msra.mxu0 %v123
  %462 = vmatprep.subr.bf16.mxu0 %v126
  %463 = vmatpush1.bf16.msra.mxu0 %v125
  %464 = vmatprep.subr.bf16.mxu0 0
  %465 = vmatpush1.bf16.msra.mxu0 0
  %466 = vmatprep.subr.bf16.mxu0 0
  %467 = vmatpush1.bf16.msra.mxu0 0
  %468 = vmatprep.subr.bf16.mxu0 0
  %469 = vmatpush1.bf16.msra.mxu0 0
  %470 = vmatprep.subr.bf16.mxu0 0
  %471 = vmatpush1.bf16.msra.mxu0 0
  %472 = vmatprep.subr.bf16.mxu0 0
  %473 = vmatpush1.bf16.msra.mxu0 0
  %474 = vmatprep.subr.bf16.mxu0 0
  %475 = vmatpush1.bf16.msra.mxu0 0
  %476 = vmatprep.subr.bf16.mxu0 0
  %477 = vmatpush1.bf16.msra.mxu0 0
  %478 = vmatprep.subr.bf16.mxu0 0
  %479 = vmatpush1.bf16.msra.mxu0 0
  %480 = vmatprep.mubr.bf16.mxu0 0
  %481 = vmatmul.mubr.bf16.gmra.mrb[0].mxu0 %v447
  %v482 = vpop.f32.mrb[0].mxu0
  %v483 = vadd.f32 0.0, %v482
  %v484 = vpop.f32.mrb[0].mxu0
  %v485 = vadd.f32 0.0, %v484
  %v486 = vpop.f32.mrb[0].mxu0
  %v487 = vpop.f32.mrb[0].mxu0
  %488 = vdwg.mxu0
  %v489 = vadd.f32 %v445, %v483
  %v490 = vxor.u32 %v489, 2147483648
  %v491 = vmul.f32 %v490, 1.442695
  %v492 = vpow.pop %v491
  %v493 = vadd.f32 %v492, 1.0
  %v494 = vrcp.pop %v493
  %v495 = vmul.f32 1.0, %v494
  %v496 = vadd.f32 %v485, %v59
  %v497 = vmul.f32 %v495, %v496
  %v498 = vadd.f32 %v446, %v497
  %v499 = vtanh.pop %v498
  %500 = vrot.lane.b32.xlu0 %v495, 64
  %v501 = vpop.permute.xlu0 %500
  %v502 = vsub.f32 %v443, %v499
  %v503 = vmul.f32 %v501, %v502
  %v504 = vadd.f32 %v499, %v503
  %s505 = scalar_lea.vmem %s0, 96
  %v506 = vld [vmem:[%s505] sm:$0xff]
  %v507 = vld [vmem:[%s505 + $0x8] sm:$0xff]
  %v508 = vpack.c.bf16 %v504, %v504
  %509 = vmatprep.subr.bf16.mxu0 %v112
  %510 = vmatpush1.bf16.msra.mxu0 %v111
  %511 = vmatprep.subr.bf16.mxu0 %v114
  %512 = vmatpush1.bf16.msra.mxu0 %v113
  %513 = vmatprep.subr.bf16.mxu0 %v116
  %514 = vmatpush1.bf16.msra.mxu0 %v115
  %515 = vmatprep.subr.bf16.mxu0 %v118
  %516 = vmatpush1.bf16.msra.mxu0 %v117
  %517 = vmatprep.subr.bf16.mxu0 %v120
  %518 = vmatpush1.bf16.msra.mxu0 %v119
  %519 = vmatprep.subr.bf16.mxu0 %v122
  %520 = vmatpush1.bf16.msra.mxu0 %v121
  %521 = vmatprep.subr.bf16.mxu0 %v124
  %522 = vmatpush1.bf16.msra.mxu0 %v123
  %523 = vmatprep.subr.bf16.mxu0 %v126
  %524 = vmatpush1.bf16.msra.mxu0 %v125
  %525 = vmatprep.subr.bf16.mxu0 0
  %526 = vmatpush1.bf16.msra.mxu0 0
  %527 = vmatprep.subr.bf16.mxu0 0
  %528 = vmatpush1.bf16.msra.mxu0 0
  %529 = vmatprep.subr.bf16.mxu0 0
  %530 = vmatpush1.bf16.msra.mxu0 0
  %531 = vmatprep.subr.bf16.mxu0 0
  %532 = vmatpush1.bf16.msra.mxu0 0
  %533 = vmatprep.subr.bf16.mxu0 0
  %534 = vmatpush1.bf16.msra.mxu0 0
  %535 = vmatprep.subr.bf16.mxu0 0
  %536 = vmatpush1.bf16.msra.mxu0 0
  %537 = vmatprep.subr.bf16.mxu0 0
  %538 = vmatpush1.bf16.msra.mxu0 0
  %539 = vmatprep.subr.bf16.mxu0 0
  %540 = vmatpush1.bf16.msra.mxu0 0
  %541 = vmatprep.mubr.bf16.mxu0 0
  %542 = vmatmul.mubr.bf16.gmra.mrb[0].mxu0 %v508
  %v543 = vpop.f32.mrb[0].mxu0
  %v544 = vadd.f32 0.0, %v543
  %v545 = vpop.f32.mrb[0].mxu0
  %v546 = vadd.f32 0.0, %v545
  %v547 = vpop.f32.mrb[0].mxu0
  %v548 = vpop.f32.mrb[0].mxu0
  %549 = vdwg.mxu0
  %v550 = vadd.f32 %v506, %v544
  %v551 = vxor.u32 %v550, 2147483648
  %v552 = vmul.f32 %v551, 1.442695
  %v553 = vpow.pop %v552
  %v554 = vadd.f32 %v553, 1.0
  %v555 = vrcp.pop %v554
  %v556 = vmul.f32 1.0, %v555
  %v557 = vadd.f32 %v546, %v59
  %v558 = vmul.f32 %v556, %v557
  %v559 = vadd.f32 %v507, %v558
  %v560 = vtanh.pop %v559
  %561 = vrot.lane.b32.xlu0 %v556, 64
  %v562 = vpop.permute.xlu0 %561
  %v563 = vsub.f32 %v504, %v560
  %v564 = vmul.f32 %v562, %v563
  %v565 = vadd.f32 %v560, %v564
  %s566 = scalar_lea.vmem %s0, 112
  %v567 = vld [vmem:[%s566] sm:$0xff]
  %v568 = vld [vmem:[%s566 + $0x8] sm:$0xff]
  %v569 = vpack.c.bf16 %v565, %v565
  %570 = vmatprep.subr.bf16.mxu0 %v112
  %571 = vmatpush1.bf16.msra.mxu0 %v111
  %572 = vmatprep.subr.bf16.mxu0 %v114
  %573 = vmatpush1.bf16.msra.mxu0 %v113
  %574 = vmatprep.subr.bf16.mxu0 %v116
  %575 = vmatpush1.bf16.msra.mxu0 %v115
  %576 = vmatprep.subr.bf16.mxu0 %v118
  %577 = vmatpush1.bf16.msra.mxu0 %v117
  %578 = vmatprep.subr.bf16.mxu0 %v120
  %579 = vmatpush1.bf16.msra.mxu0 %v119
  %580 = vmatprep.subr.bf16.mxu0 %v122
  %581 = vmatpush1.bf16.msra.mxu0 %v121
  %582 = vmatprep.subr.bf16.mxu0 %v124
  %583 = vmatpush1.bf16.msra.mxu0 %v123
  %584 = vmatprep.subr.bf16.mxu0 %v126
  %585 = vmatpush1.bf16.msra.mxu0 %v125
  %586 = vmatprep.subr.bf16.mxu0 0
  %587 = vmatpush1.bf16.msra.mxu0 0
  %588 = vmatprep.subr.bf16.mxu0 0
  %589 = vmatpush1.bf16.msra.mxu0 0
  %590 = vmatprep.subr.bf16.mxu0 0
  %591 = vmatpush1.bf16.msra.mxu0 0
  %592 = vmatprep.subr.bf16.mxu0 0
  %593 = vmatpush1.bf16.msra.mxu0 0
  %594 = vmatprep.subr.bf16.mxu0 0
  %595 = vmatpush1.bf16.msra.mxu0 0
  %596 = vmatprep.subr.bf16.mxu0 0
  %597 = vmatpush1.bf16.msra.mxu0 0
  %598 = vmatprep.subr.bf16.mxu0 0
  %599 = vmatpush1.bf16.msra.mxu0 0
  %600 = vmatprep.subr.bf16.mxu0 0
  %601 = vmatpush1.bf16.msra.mxu0 0
  %602 = vmatprep.mubr.bf16.mxu0 0
  %603 = vmatmul.mubr.bf16.gmra.mrb[0].mxu0 %v569
  %v604 = vpop.f32.mrb[0].mxu0
  %v605 = vadd.f32 0.0, %v604
  %v606 = vpop.f32.mrb[0].mxu0
  %v607 = vadd.f32 0.0, %v606
  %v608 = vpop.f32.mrb[0].mxu0
  %v609 = vpop.f32.mrb[0].mxu0
  %610 = vdwg.mxu0
  %v611 = vadd.f32 %v567, %v605
  %v612 = vxor.u32 %v611, 2147483648
  %v613 = vmul.f32 %v612, 1.442695
  %v614 = vpow.pop %v613
  %v615 = vadd.f32 %v614, 1.0
  %v616 = vrcp.pop %v615
  %v617 = vmul.f32 1.0, %v616
  %v618 = vadd.f32 %v607, %v59
  %v619 = vmul.f32 %v617, %v618
  %v620 = vadd.f32 %v568, %v619
  %v621 = vtanh.pop %v620
  %622 = vrot.lane.b32.xlu0 %v617, 64
  %v623 = vpop.permute.xlu0 %622
  %v624 = vsub.f32 %v565, %v621
  %v625 = vmul.f32 %v623, %v624
  %v626 = vadd.f32 %v621, %v625
  %v627 = vpack.c.bf16 %v626, %v626
  %v629 = vlaneseq
  %v630 = vshrl.u32 %v629, 7
  %v631 = vsub.s32 0, %v630
  %v632 = vrot.slane %v53, %v631
  %v650 = vunpack.c.l.b16 %v37
  %v651 = vunpack.c.l.b16 %v38
  %v652 = vunpack.c.l.b16 %v39
  %v653 = vunpack.c.l.b16 %v40
  %v654 = vunpack.c.l.b16 %v41
  %v655 = vunpack.c.l.b16 %v42
  %v656 = vunpack.c.l.b16 %v43
  %v657 = vunpack.c.l.b16 %v44
  %v658 = vunpack.c.l.b16 %v45
  %v659 = vunpack.c.l.b16 %v46
  %v660 = vunpack.c.l.b16 %v47
  %v661 = vunpack.c.l.b16 %v48
  %v662 = vunpack.c.l.b16 %v49
  %v663 = vunpack.c.l.b16 %v50
  %v664 = vunpack.c.l.b16 %v51
  %v665 = vunpack.c.l.b16 %v52
  %v666 = vpack.c.b16 %v651, %v650
  %v667 = vpack.c.b16 %v653, %v652
  %v668 = vpack.c.b16 %v655, %v654
  %v669 = vpack.c.b16 %v657, %v656
  %v670 = vpack.c.b16 %v659, %v658
  %v671 = vpack.c.b16 %v661, %v660
  %v672 = vpack.c.b16 %v663, %v662
  %v673 = vpack.c.b16 %v665, %v664
  %682 = vmatprep.subr.bf16.mxu0 0
  %683 = vmatpush1.bf16.msra.mxu0 %v666
  %684 = vmatprep.subr.bf16.mxu0 0
  %685 = vmatpush1.bf16.msra.mxu0 %v667
  %686 = vmatprep.subr.bf16.mxu0 0
  %687 = vmatpush1.bf16.msra.mxu0 %v668
  %688 = vmatprep.subr.bf16.mxu0 0
  %689 = vmatpush1.bf16.msra.mxu0 %v669
  %690 = vmatprep.subr.bf16.mxu0 0
  %691 = vmatpush1.bf16.msra.mxu0 %v670
  %692 = vmatprep.subr.bf16.mxu0 0
  %693 = vmatpush1.bf16.msra.mxu0 %v671
  %694 = vmatprep.subr.bf16.mxu0 0
  %695 = vmatpush1.bf16.msra.mxu0 %v672
  %696 = vmatprep.subr.bf16.mxu0 0
  %697 = vmatpush1.bf16.msra.mxu0 %v673
  %698 = vmatprep.subr.bf16.mxu0 0
  %699 = vmatpush1.bf16.msra.mxu0 0
  %700 = vmatprep.subr.bf16.mxu0 0
  %701 = vmatpush1.bf16.msra.mxu0 0
  %702 = vmatprep.subr.bf16.mxu0 0
  %703 = vmatpush1.bf16.msra.mxu0 0
  %704 = vmatprep.subr.bf16.mxu0 0
  %705 = vmatpush1.bf16.msra.mxu0 0
  %706 = vmatprep.subr.bf16.mxu0 0
  %707 = vmatpush1.bf16.msra.mxu0 0
  %708 = vmatprep.subr.bf16.mxu0 0
  %709 = vmatpush1.bf16.msra.mxu0 0
  %710 = vmatprep.subr.bf16.mxu0 0
  %711 = vmatpush1.bf16.msra.mxu0 0
  %712 = vmatprep.subr.bf16.mxu0 0
  %713 = vmatpush1.bf16.msra.mxu0 0
  %714 = vmatprep.mubr.bf16.mxu0 0
  %715 = vmatmul.mubr.bf16.gmra.mrb[0].mxu0 %v627
  %v716 = vpop.f32.mrb[0].mxu0
  %v717 = vadd.f32 %v632, %v716
  %v718 = vpop.f32.mrb[0].mxu0
  %v719 = vpop.f32.mrb[0].mxu0
  %v720 = vpop.f32.mrb[0].mxu0
  %721 = vdwg.mxu0
  %722 = vst [vmem:[%s5] sm:$0xff] %v717
  // Predicated region
  $region22: #{lstm_path_forward.1} parent=0 // pred_check
    _
  $region23: #{lstm_path_forward.1} parent=0 // pred_check_branch
    %724 = sbr.rel (0) target = $region25
  $region24: #{lstm_path_forward.1} parent=0 // pred_region
    _
  $region25: #{lstm_path_forward.1} parent=0 // pred_fallthru
    _
  // Predicated region
  $region26: #{lstm_path_forward.1} parent=0 // pred_check
    _
  $region27: #{lstm_path_forward.1} parent=0 // pred_check_branch
    %726 = sbr.rel (0) target = $region29
  $region28: #{lstm_path_forward.1} parent=0 // pred_region
    _
  $region29: #{lstm_path_forward.1} parent=0 // pred_fallthru
    _

</llo_original>
